<compile_context>
chip_gen: v6e
topology: v6e:2x2x1
jax: 0.10.0
libtpu: 0.0.40
codegen_flags: <defaults>
</compile_context>

<pallas_src>
import functools

import jax
import jax.numpy as jnp
import numpy as np
from jax.experimental import pallas as pl
from jax.experimental.pallas import tpu as pltpu


def _asp_kernel(x_ref, u_ref, c_ref, mean_ref, var_ref, *, inv_t):
    # x_ref   : (TB, T, D) input block, native dtype (f32 or bf16)
    # u_ref   : (1, D)     folded attention vector u = W^T v (f32)
    # c_ref   : (1,)       folded scalar c = b . v  (SMEM, f32)
    # mean_ref: (TB, D)    weighted mean output block (f32)
    # var_ref : (TB, D)    weighted var  output block (f32)
    x = x_ref[...].astype(jnp.float32)                                # (TB, T, D)
    u = u_ref[...].astype(jnp.float32)                                # (1, D)
    c = c_ref[0]                                                      # scalar

    # Attention scores, lane-dense over T: tanh(x . u + c) -> (TB, T).
    scores = jnp.tanh(jnp.sum(x * u, axis=-1) + c)                    # (TB, T)

    # Softmax over T.  scores ∈ (-1, 1) so exp cannot overflow: no max-subtract.
    e = jnp.exp(scores)                                               # (TB, T)
    attn = e * pl.reciprocal(jnp.sum(e, axis=-1, keepdims=True),
                             approx=False)                            # (TB, T)

    # Broadcast attn back against x (single relayout, hidden under DMA).
    wx = x * attn[:, :, None]                                         # (TB, T, D)
    mean = jnp.sum(wx, axis=1) * inv_t                                # (TB, D)
    var = jnp.sum(x * wx, axis=1) - mean * mean                       # (TB, D)

    mean_ref[...] = mean
    var_ref[...] = var


def _choose_batch_tile(B, T, D, target_bytes=4 << 20):
    """Batch tile TB. Output block needs TB % 8 == 0 or TB == B; prefer >= 2 grid steps."""
    if B % 8 != 0:
        return B                          # small / odd batch: one full-batch block
    row_bytes = T * D * 4                 # f32 working-set per batch row
    best = 8
    cand = 16
    while cand <= B // 2:                 # cap at B//2 so the grid has >= 2 steps
        if B % cand == 0 and cand * row_bytes <= target_bytes:
            best = cand
        cand += 8
    # NOTE: B == 8 still yields a single grid step (one v7x TC idle); splitting T
    # onto a second "arbitrary" grid axis with an online softmax would fix that.
    return best


def asp_forward(x, W, b, v, *, batch_tile=None, input_buffers=None):
    """x: (B, T, D) f32 or bf16; W: (D, D) torch Linear weight (out, in); b, v: (D,)."""
    B, T, D = x.shape

    # Fold the linear projection into the score: (x @ W^T + b) @ v = x @ (W^T v) + b.v
    u = (W.T.astype(jnp.float32) @ v.astype(jnp.float32)).reshape(1, D)      # (1, D)
    c = jnp.dot(b.astype(jnp.float32), v.astype(jnp.float32)).reshape(1)     # (1,)

    TB = batch_tile if batch_tile is not None else _choose_batch_tile(B, T, D)
    assert B % TB == 0, "batch_tile must divide the batch size"
    grid = (B // TB,)

    # VMEM budget: double-buffered x DMA (native dtype) + in-kernel f32 copy and
    # intermediates + double-buffered outputs + u, with headroom.  Cap at 32 MiB
    # (and at half the physical per-core VMEM — v7x only has 64 MiB).
    in_itemsize = jnp.dtype(x.dtype).itemsize
    x_in_block = TB * T * D * in_itemsize
    x_f32_block = TB * T * D * 4
    out_block = TB * D * 4
    vmem_needed = (2 * x_in_block + 3 * x_f32_block + 4 * out_block
                   + D * 4 + (2 << 20))
    try:
        vmem_cap = pltpu.get_tpu_info().vmem_capacity_bytes
    except Exception:
        vmem_cap = 64 << 20
    vmem_limit = int(min(max(vmem_needed, 8 << 20), 32 << 20, vmem_cap // 2))

    x_spec_kwargs = {}
    if input_buffers is not None:         # sweepable knob; default = double buffering
        x_spec_kwargs["pipeline_mode"] = pl.Buffered(input_buffers)

    cost = pl.CostEstimate(
        flops=6 * B * T * D,
        transcendentals=2 * B * T,
        bytes_accessed=B * T * D * in_itemsize + 2 * B * D * 4 + D * 4,
    )

    mean, var = pl.pallas_call(
        functools.partial(_asp_kernel, inv_t=1.0 / T),
        out_shape=(
            jax.ShapeDtypeStruct((B, D), jnp.float32),
            jax.ShapeDtypeStruct((B, D), jnp.float32),
        ),
        grid_spec=pltpu.PrefetchScalarGridSpec(
            num_scalar_prefetch=0,
            grid=grid,
            in_specs=[
                pl.BlockSpec((TB, T, D), lambda i: (i, 0, 0), **x_spec_kwargs),
                pl.BlockSpec((1, D), lambda i: (0, 0)),
                pl.BlockSpec(memory_space=pltpu.MemorySpace.SMEM),
            ],
            out_specs=[
                pl.BlockSpec((TB, D), lambda i: (i, 0)),
                pl.BlockSpec((TB, D), lambda i: (i, 0)),
            ],
        ),
        compiler_params=pltpu.CompilerParams(
            dimension_semantics=("parallel",),
            vmem_limit_bytes=vmem_limit,
        ),
        cost_estimate=cost,
    )(x, u, c)

    return jnp.concatenate([mean, var], axis=1)                       # (B, 2D)


def _asp_reference(x, W, b, v):
    # Pure-JAX reference mirroring the PyTorch forward exactly.
    x = x.astype(jnp.float32)
    lin = jnp.einsum("btd,ed->bte", x, W) + b                    # (B, T, D)
    scores = jnp.tanh(jnp.einsum("bte,e->bt", lin, v))           # (B, T)
    attn = jax.nn.softmax(scores, axis=1)                        # (B, T)
    el = x * attn[:, :, None]                                    # (B, T, D)
    mean = jnp.mean(el, axis=1)                                  # (B, D) (torch.mean over T)
    var = jnp.sum(x * el, axis=1) - mean * mean                  # (B, D)
    return jnp.concatenate([mean, var], axis=1)                  # (B, 2D)


if __name__ == "__main__":
    key = jax.random.PRNGKey(0)
    B, T, D = 2, 8, 32

    k_x, k_w, k_b, k_v = jax.random.split(key, 4)
    x = jax.random.normal(k_x, (B, T, D), dtype=jnp.float32)
    # Deterministic synthetic parameters (shapes match nn.Linear(D, D) and v of size D).
    W = jax.random.normal(k_w, (D, D), dtype=jnp.float32) * (1.0 / np.sqrt(D))
    b = jax.random.normal(k_b, (D,), dtype=jnp.float32) * 0.1
    v = jax.random.normal(k_v, (D,), dtype=jnp.float32)

    # f32 path
    out = jax.block_until_ready(asp_forward(x, W, b, v))
    ref = _asp_reference(x, W, b, v)
    np.testing.assert_allclose(np.asarray(out), np.asarray(ref), rtol=1e-4, atol=1e-5)

    # bf16-storage path (kernel upcasts after load; stats accumulated in f32).
    x_bf16 = x.astype(jnp.bfloat16)
    out_bf = jax.block_until_ready(asp_forward(x_bf16, W, b, v))
    ref_bf = _asp_reference(x_bf16.astype(jnp.float32), W, b, v)
    np.testing.assert_allclose(np.asarray(out_bf), np.asarray(ref_bf), rtol=1e-4, atol=1e-4)

    print("KERNEL_OK")
</pallas_src>

<mosaic_0001>
module attributes {stable_mosaic.version = 11 : i64} {
  func.func @_asp_kernel(%arg0: i32, %arg1: memref<2x8x32xf32, #tpu.memory_space<vmem>>, %arg2: memref<1x32xf32, #tpu.memory_space<vmem>>, %arg3: memref<1xf32, #tpu.memory_space<smem>>, %arg4: memref<2x32xf32, #tpu.memory_space<vmem>>, %arg5: memref<2x32xf32, #tpu.memory_space<vmem>>) attributes {dimension_semantics = [#tpu.dimension_semantics<parallel>], iteration_bounds = array<i64: 1>, scalar_prefetch = 0 : i64, scratch_operands = 0 : i64, tpu.core_type = #tpu.core_type<tc>, window_params = [{transform_indices = @transform_0, window_bounds = array<i64: 2, 8, 32>}, {pipeline_mode = #tpu.pipeline_mode<synchronous>, transform_indices = @transform_1, window_bounds = array<i64: 1, 32>}, {transform_indices = @transform_2, window_bounds = array<i64: 1>}, {transform_indices = @transform_3, window_bounds = array<i64: 2, 32>}, {transform_indices = @transform_4, window_bounds = array<i64: 2, 32>}]} {
    %c0 = arith.constant 0 : index
    %c0_0 = arith.constant 0 : index
    %c0_1 = arith.constant 0 : index
    %0 = vector.load %arg1[%c0, %c0_0, %c0_1] : memref<2x8x32xf32, #tpu.memory_space<vmem>>, vector<2x8x32xf32>
    %c0_2 = arith.constant 0 : index
    %c0_3 = arith.constant 0 : index
    %1 = vector.load %arg2[%c0_2, %c0_3] : memref<1x32xf32, #tpu.memory_space<vmem>>, vector<1x32xf32>
    %c0_4 = arith.constant 0 : index
    %2 = memref.load %arg3[%c0_4] : memref<1xf32, #tpu.memory_space<smem>>
    %3 = vector.shape_cast %1 : vector<1x32xf32> to vector<1x1x32xf32>
    %4 = vector.broadcast %3 : vector<1x1x32xf32> to vector<2x8x32xf32>
    %5 = arith.mulf %0, %4 : vector<2x8x32xf32>
    %cst = arith.constant dense<0.000000e+00> : vector<2x8xf32>
    %6 = vector.multi_reduction <add>, %5, %cst [2] : vector<2x8x32xf32> to vector<2x8xf32>
    %7 = vector.broadcast %2 : f32 to vector<2x8xf32>
    %8 = arith.addf %6, %7 : vector<2x8xf32>
    %9 = math.tanh %8 : vector<2x8xf32>
    %10 = math.exp %9 : vector<2x8xf32>
    %cst_5 = arith.constant dense<0.000000e+00> : vector<2xf32>
    %11 = vector.multi_reduction <add>, %10, %cst_5 [1] : vector<2x8xf32> to vector<2xf32>
    %12 = vector.shape_cast %11 : vector<2xf32> to vector<2x1xf32>
    %13 = tpu.reciprocal %12 : vector<2x1xf32> -> vector<2x1xf32>
    %14 = vector.broadcast %13 : vector<2x1xf32> to vector<2x8xf32>
    %15 = arith.mulf %10, %14 : vector<2x8xf32>
    %16 = vector.shape_cast %15 : vector<2x8xf32> to vector<2x8x1xf32>
    %17 = vector.broadcast %16 : vector<2x8x1xf32> to vector<2x8x32xf32>
    %18 = arith.mulf %0, %17 : vector<2x8x32xf32>
    %cst_6 = arith.constant dense<0.000000e+00> : vector<2x32xf32>
    %19 = vector.multi_reduction <add>, %18, %cst_6 [1] : vector<2x8x32xf32> to vector<2x32xf32>
    %cst_7 = arith.constant 1.250000e-01 : f32
    %20 = vector.broadcast %cst_7 : f32 to vector<2x32xf32>
    %21 = arith.mulf %19, %20 : vector<2x32xf32>
    %22 = arith.mulf %0, %18 : vector<2x8x32xf32>
    %cst_8 = arith.constant dense<0.000000e+00> : vector<2x32xf32>
    %23 = vector.multi_reduction <add>, %22, %cst_8 [1] : vector<2x8x32xf32> to vector<2x32xf32>
    %24 = arith.mulf %21, %21 : vector<2x32xf32>
    %25 = arith.subf %23, %24 : vector<2x32xf32>
    %c0_9 = arith.constant 0 : index
    %c0_10 = arith.constant 0 : index
    %26 = vector.load %arg4[%c0_9, %c0_10] : memref<2x32xf32, #tpu.memory_space<vmem>>, vector<2x32xf32>
    tpu.vector_store %arg4[%c0_9, %c0_10], %21 {strides = array<i32>} : memref<2x32xf32, #tpu.memory_space<vmem>>, vector<2x32xf32>,
    %c0_11 = arith.constant 0 : index
    %c0_12 = arith.constant 0 : index
    %27 = vector.load %arg5[%c0_11, %c0_12] : memref<2x32xf32, #tpu.memory_space<vmem>>, vector<2x32xf32>
    tpu.vector_store %arg5[%c0_11, %c0_12], %25 {strides = array<i32>} : memref<2x32xf32, #tpu.memory_space<vmem>>, vector<2x32xf32>,
    return
  }
  func.func @transform_0(%arg0: i32) -> (i32, i32, i32) {
    %c0_i32 = arith.constant 0 : i32
    %c0_i32_0 = arith.constant 0 : i32
    %c0_i32_1 = arith.constant 0 : i32
    return %arg0, %c0_i32, %c0_i32_0 : i32, i32, i32
  }
  func.func @transform_1(%arg0: i32) -> (i32, i32) {
    %c0_i32 = arith.constant 0 : i32
    %c0_i32_0 = arith.constant 0 : i32
    %c0_i32_1 = arith.constant 0 : i32
    return %c0_i32, %c0_i32_0 : i32, i32
  }
  func.func @transform_2(%arg0: i32) -> i32 {
    %c0_i32 = arith.constant 0 : i32
    %c0_i32_0 = arith.constant 0 : i32
    return %c0_i32 : i32
  }
  func.func @transform_3(%arg0: i32) -> (i32, i32) {
    %c0_i32 = arith.constant 0 : i32
    %c0_i32_0 = arith.constant 0 : i32
    return %arg0, %c0_i32 : i32, i32
  }
  func.func @transform_4(%arg0: i32) -> (i32, i32) {
    %c0_i32 = arith.constant 0 : i32
    %c0_i32_0 = arith.constant 0 : i32
    return %arg0, %c0_i32 : i32, i32
  }
}

</mosaic_0001>

<llo_original>
// kernel: tpu_custom_call.1
$region0: #{tpu_custom_call.1}
  #allocation0 [shape = 'u32[]', space=smem, size = 0x4, offset = 0x4, fixed_abs, tag = 'smem constant byte address 0x4 - core index']
  #allocation1 [shape = 'u32[144,128]{1,0:T(1,128)}', space=vmem, size = 0x12000, scoped, tag = 'internal scratch']
  #allocation2 [shape = 'f32[1]{0:T(128)S(6)}', space=smem, size = 0x200, scoped, tag = 'scoped memory for tpu_custom_call.1']
  %s0 = inlined_call_operand.hbm [shape: f32[2,8,32], index: 0, kind: input, shape index: {}]
  %s1 = inlined_call_operand.vmem [shape: f32[1,32], index: 1, kind: input, shape index: {}]
  %s2 = inlined_call_operand.<no memory space> [shape: f32[1], index: 2, kind: input, shape index: {}]
  %s3 = inlined_call_operand.hbm [shape: f32[2,32], index: 3, kind: output, shape index: {0}]
  %s4 = inlined_call_operand.hbm [shape: f32[2,32], index: 4, kind: output, shape index: {1}]
  %5 = xla_tuple %s3, %s4
  %s6 = sld [smem:[#allocation0]]
  $region34: #{tpu_custom_call.1} parent=0
    _
  %s8 = ssub.s32 1, %s6
  %s9 = scalar_select 0, %s8, %s6
  %10 = sst [smem:[#allocation2]] %s2
  $region1: #{tpu_custom_call.1} parent=0
    #allocation3 [shape = 'u8[8192]{0}', space=vmem, size = 0x2000, scoped, tag = 'input window, operand 0, single buffered']
    #allocation4 [shape = 's32[1]{0}', space=sflag, size = 0x4, scoped, tag = 'scoped memory for tpu_custom_call.1']
    #allocation5 [shape = 's32[1]{0}', space=sflag, size = 0x4, scoped, tag = 'scoped memory for tpu_custom_call.1']
    #allocation6 [shape = 'u8[1024]{0}', space=vmem, size = 0x400, scoped, tag = 'output window, operand 0, single buffered']
    #allocation7 [shape = 'u8[1024]{0}', space=vmem, size = 0x400, scoped, tag = 'output window, operand 1, single buffered']
    #allocation8 [shape = 's32[1]{0}', space=sflag, size = 0x4, scoped, tag = 'scoped memory for tpu_custom_call.1']
    %11 = vsyncpa [#allocation4], 0
    %12 = vsyncpa [#allocation5], 0
    %13 = vsyncpa [#allocation8], 0
    // Predicated region
    $region2: #{tpu_custom_call.1} parent=1 // pred_check
      _
    $region3: #{tpu_custom_call.1} parent=1 // pred_check_branch
      %15 = sbr.rel (0) target = $region5
    $region4: #{tpu_custom_call.1} parent=1 // pred_region
      %s17 = ssub.s32 256, 256
      %18 = vsyncadd [#allocation4], %s17
      %s19 = sshll.u32 [#allocation3], 4
      %s20 = int_to_ptr.vmem [resolvable:$true] %s19
      %25 = dma.hbm_to_vmem [thread:$0]  %s0, 256, %s20, [#allocation4], 128, 128, 8
    $region5: #{tpu_custom_call.1} parent=1 // pred_fallthru
      _
    // Predicated region
    $region6: #{tpu_custom_call.1} parent=1 // pred_check
      _
    $region7: #{tpu_custom_call.1} parent=1 // pred_check_branch
      %27 = sbr.rel (0) target = $region9
    $region8: #{tpu_custom_call.1} parent=1 // pred_region
      _
    $region9: #{tpu_custom_call.1} parent=1 // pred_fallthru
      _
    // Predicated region
    $region10: #{tpu_custom_call.1} parent=1 // pred_check
      _
    $region11: #{tpu_custom_call.1} parent=1 // pred_check_branch
      %29 = sbr.rel (0) target = $region13
    $region12: #{tpu_custom_call.1} parent=1 // pred_region
      _
    $region13: #{tpu_custom_call.1} parent=1 // pred_fallthru
      _
    // Predicated region
    $region14: #{tpu_custom_call.1} parent=1 // pred_check
      _
    $region15: #{tpu_custom_call.1} parent=1 // pred_check_branch
      %31 = sbr.rel (0) target = $region17
    $region16: #{tpu_custom_call.1} parent=1 // pred_region
      %32 = dma.done [#allocation4], 256
    $region17: #{tpu_custom_call.1} parent=1 // pred_fallthru
      _
    %v33 = vld [vmem:[#allocation3] sm:$0xff]
    %v34 = vld [vmem:[#allocation3 + $0x8] sm:$0xff]
    %v35 = vld [vmem:[%s1] sm:$0x1]
    %s36 = sld [smem:[#allocation2]]
    %v38 = vlaneseq
    %v39 = vshrl.u32 %v38, 7
    %v40 = vsub.s32 0, %v39
    %v41 = vrot.slane %v35, %v40
    %v43 = vmul.f32 %v33, %v41
    %v44 = vmul.f32 %v34, %v41
    %vm45 = vcmask 261120
    %v46 = vsel %vm45, %v43, 0.0
    %47 = vadd.xlane.f32.xlu0 %v46
    %v48 = vpop.xlane.xlu0 %47
    %v49 = vsel %vm45, %v44, 0.0
    %50 = vadd.xlane.f32.xlu0 %v49
    %v51 = vpop.xlane.xlu0 %50
    %v52 = vstv %s36
    %v53 = vadd.f32 %v48, %v52
    %v54 = vadd.f32 %v51, %v52
    %v55 = vtanh.pop %v53
    %v56 = vtanh.pop %v54
    %v57 = vmul.f32 %v55, 1.442695
    %v58 = vpow.pop %v57
    %v59 = vmul.f32 %v56, 1.442695
    %v60 = vpow.pop %v59
    %v63 = vlaneseq
    %v64 = vand.u32 %v63, 127
    %v65 = vlaneseq
    %v66 = vshrl.u32 %v65, 7
    %v67 = vsub.s32 %v64, %v66
    %v68 = vrot.slane %v58, %v67
    %v69 = vlaneseq
    %v70 = vshrl.u32 %v69, 7
    %v71 = vsub.s32 %v64, %v70
    %v72 = vrot.slane %v60, %v71
    %vm73 = vcmask 1041409
    %v74 = vsel %vm73, %v72, %v68
    %vm76 = vcmask 58368
    %v77 = vsel %vm76, %v74, 0.0
    %78 = vadd.xlane.f32.xlu0 %v77
    %v79 = vpop.xlane.xlu0 %78
    %v80 = vrcp.pop %v79
    %v82 = vlaneseq
    %v83 = vshrl.u32 %v82, 7
    %v84 = vsub.s32 0, %v83
    %v85 = vrot.slane %v80, %v84
    %v86 = vlaneseq
    %v87 = vshrl.u32 %v86, 7
    %v88 = vsub.s32 1, %v87
    %v89 = vrot.slane %v80, %v88
    %v92 = vmul.f32 %v58, %v85
    %v93 = vmul.f32 %v60, %v89
    %95 = vset.pattern.permute.xlu0 0
    %96 = vperm.xlu0 %95, %v92
    %v97 = vpop.permute.xlu0 %96
    %100 = vset.pattern.permute.xlu0 0
    %101 = vperm.xlu0 %100, %v93
    %v102 = vpop.permute.xlu0 %101
    %v104 = vmul.f32 %v33, %v97
    %v105 = vmul.f32 %v34, %v102
    %v106 = vsel %vm45, %v104, 0.0
    %v107 = vrot.slane %v106, 4
    %v108 = vadd.f32 %v106, %v107
    %v109 = vrot.slane %v108, 2
    %v110 = vadd.f32 %v108, %v109
    %v111 = vrot.slane %v110, 1
    %v112 = vadd.f32 %v110, %v111
    %v113 = vsel %vm45, %v105, 0.0
    %v114 = vrot.slane %v113, 4
    %v115 = vadd.f32 %v113, %v114
    %v116 = vrot.slane %v115, 2
    %v117 = vadd.f32 %v115, %v116
    %v118 = vrot.slane %v117, 1
    %v119 = vadd.f32 %v117, %v118
    %v120 = vmul.f32 %v112, 0.125
    %v121 = vmul.f32 %v119, 0.125
    %v122 = vmul.f32 %v33, %v104
    %v123 = vmul.f32 %v34, %v105
    %v124 = vsel %vm45, %v122, 0.0
    %v125 = vrot.slane %v124, 4
    %v126 = vadd.f32 %v124, %v125
    %v127 = vrot.slane %v126, 2
    %v128 = vadd.f32 %v126, %v127
    %v129 = vrot.slane %v128, 1
    %v130 = vadd.f32 %v128, %v129
    %v131 = vsel %vm45, %v123, 0.0
    %v132 = vrot.slane %v131, 4
    %v133 = vadd.f32 %v131, %v132
    %v134 = vrot.slane %v133, 2
    %v135 = vadd.f32 %v133, %v134
    %v136 = vrot.slane %v135, 1
    %v137 = vadd.f32 %v135, %v136
    %v138 = vmul.f32 %v120, %v120
    %v139 = vmul.f32 %v121, %v121
    %v140 = vsub.f32 %v130, %v138
    %v141 = vsub.f32 %v137, %v139
    %v144 = vsel %vm73, %v121, %v120
    %vm146 = vcmask 254976
    %147 = vst.msk [vmem:[#allocation6] sm:$0x3] %vm146, %v144
    %v150 = vsel %vm73, %v141, %v140
    %152 = vst.msk [vmem:[#allocation7] sm:$0x3] %vm146, %v150
    // Predicated region
    $region18: #{tpu_custom_call.1} parent=1 // pred_check
      _
    $region19: #{tpu_custom_call.1} parent=1 // pred_check_branch
      %154 = sbr.rel (0) target = $region21
    $region20: #{tpu_custom_call.1} parent=1 // pred_region
      %s156 = ssub.s32 32, 32
      %157 = vsyncadd [#allocation5], %s156
      %s159 = sshll.u32 [#allocation6], 4
      %s160 = int_to_ptr.vmem [resolvable:$true] %s159
      %162 = dma.vmem_to_hbm [thread:$0]  %s160, 32, %s3, [#allocation5]
    $region21: #{tpu_custom_call.1} parent=1 // pred_fallthru
      _
    // Predicated region
    $region22: #{tpu_custom_call.1} parent=1 // pred_check
      _
    $region23: #{tpu_custom_call.1} parent=1 // pred_check_branch
      %164 = sbr.rel (0) target = $region25
    $region24: #{tpu_custom_call.1} parent=1 // pred_region
      %s166 = ssub.s32 32, 32
      %167 = vsyncadd [#allocation8], %s166
      %s169 = sshll.u32 [#allocation7], 4
      %s170 = int_to_ptr.vmem [resolvable:$true] %s169
      %172 = dma.vmem_to_hbm [thread:$0]  %s170, 32, %s4, [#allocation8]
    $region25: #{tpu_custom_call.1} parent=1 // pred_fallthru
      _
    // Predicated region
    $region26: #{tpu_custom_call.1} parent=1 // pred_check
      _
    $region27: #{tpu_custom_call.1} parent=1 // pred_check_branch
      %174 = sbr.rel (0) target = $region29
    $region28: #{tpu_custom_call.1} parent=1 // pred_region
      %175 = dma.done [#allocation5], 32
    $region29: #{tpu_custom_call.1} parent=1 // pred_fallthru
      _
    // Predicated region
    $region30: #{tpu_custom_call.1} parent=1 // pred_check
      _
    $region31: #{tpu_custom_call.1} parent=1 // pred_check_branch
      %177 = sbr.rel (0) target = $region33
    $region32: #{tpu_custom_call.1} parent=1 // pred_region
      %178 = dma.done [#allocation8], 32
    $region33: #{tpu_custom_call.1} parent=1 // pred_fallthru
      _
    %179 = vsyncpa [#allocation4], 1
    %180 = vsyncpa [#allocation5], 1
    %181 = vsyncpa [#allocation8], 1

</llo_original>
